<compile_context>
chip_gen: v7x
topology: tpu7x:2x2x1
jax: 0.10.0
libtpu: 0.0.40
codegen_flags: <defaults>
</compile_context>

<pallas_src>
import functools

import jax
import jax.numpy as jnp
from jax.experimental import pallas as pl
from jax.experimental.pallas import tpu as pltpu

BN_EPS = 1e-5


def _id_block1d_kernel(x_ref, w_ref, bn_ref, o_ref, *,
                       B, C0, C1, C2, K1, K2, L, Lpad):
    """Fused residual block.

    x_ref  : (B*C0, Lpad) f32   lane-dense activations (zero in lanes >= L)
    w_ref  : (K1+K2, Rmax, Rmax) f32   per-tap block-diagonal conv weights
    bn_ref : (Cmax, 4) f32   columns [gamma1, beta1, gamma2, beta2]
    o_ref  : (B*C2, Lpad) f32
    """
    x = x_ref[...]                    # (B*C0, Lpad) -- one full vreg at toy size
    w_all = w_ref[...]                # tiny
    bn = bn_ref[...]                  # tiny

    inv_n = 1.0 / float(B * L)

    # hoisted valid-lane mask, reused by both convs and the BN re-mask
    lane = jax.lax.broadcasted_iota(jnp.int32, (1, Lpad), 1)
    valid = (lane < L).astype(jnp.float32)                       # (1, Lpad)

    def conv(xin, k0, K, rows_out, rows_in):
        # "same" conv (odd K), stride 1, no bias (cancelled by training BN).
        # K small dot-accumulates; taps are lane rotations (XLU), the zero
        # padding lanes provide the conv's edge zeros.
        pad = (K - 1) // 2
        acc = None
        for k in range(K):                                       # static unroll
            s = k - pad                                          # tap offset
            tap = xin if s == 0 else pltpu.roll(xin, shift=(-s) % Lpad, axis=1)
            w_k = w_all[k0 + k, 0:rows_out, 0:rows_in]           # (B*Co, B*Ci)
            y = jnp.dot(w_k, tap, preferred_element_type=jnp.float32)
            acc = y if acc is None else acc + y
        return acc * valid            # zero the padding lanes (kills roll wrap)

    def bn_apply(h, col_g, col_b, C, do_relu):
        # One-pass training-mode BN stats (biased variance), folded to a
        # per-row scale/bias FMA.  Lane reductions go to the XLU slot.
        s1 = jnp.sum(h, axis=1, keepdims=True)                   # (B*C, 1)
        s2 = jnp.sum(h * h, axis=1, keepdims=True)               # (B*C, 1)
        s1c = s1[0:C]
        s2c = s2[0:C]
        for b in range(1, B):                                    # static, tiny
            s1c = s1c + s1[b * C:(b + 1) * C]
            s2c = s2c + s2[b * C:(b + 1) * C]
        mean = s1c * inv_n                                       # (C, 1)
        var = s2c * inv_n - mean * mean
        gamma = bn[0:C, col_g:col_g + 1]
        beta = bn[0:C, col_b:col_b + 1]
        scale_c = gamma * jax.lax.rsqrt(var + BN_EPS)
        bias_c = beta - mean * scale_c
        scale = jnp.concatenate([scale_c] * B, axis=0)           # (B*C, 1)
        bias = jnp.concatenate([bias_c] * B, axis=0)
        out = h * scale + bias
        if do_relu:
            out = jnp.maximum(out, 0.0)
        return out

    # post-activation (pre_actv == False) branch of id_Block1d.forward
    h = conv(x, 0, K1, B * C1, B * C0)
    h = bn_apply(h, 0, 1, C1, do_relu=True) * valid   # re-mask: BN bias leaks into pad lanes
    h = conv(h, K1, K2, B * C2, B * C1)
    h = bn_apply(h, 2, 3, C2, do_relu=False)
    o_ref[...] = jnp.maximum(h + x, 0.0)              # residual add + ReLU, lane-dense store


def id_block1d_forward(x, params):
    """x: (B, C0, L) float32.  params: (w1, b1, g1, be1, w2, b2, g2, be2)."""
    w1, b1, g1, be1, w2, b2, g2, be2 = params
    # conv biases are exactly cancelled by the training-mode BN mean subtraction
    del b1, b2
    B, C0, L = x.shape
    C1, _, K1 = w1.shape
    C2, _, K2 = w2.shape
    assert C2 == C0, "residual add requires channel[2] == channel[0]"

    Lpad = max(128, ((L + 127) // 128) * 128)          # lane-dense last axis
    Rmax = B * max(C0, C1, C2)
    Cmax = max(C1, C2)

    # (B, C, L) -> (B*C, L) is a free reshape (no HBM transpose); pad lanes to 128.
    x2d = jnp.pad(x.reshape(B * C0, L), ((0, 0), (0, Lpad - L)))

    # per-tap block-diagonal weights: rows b*Co+o, cols b*Ci+i
    eye_b = jnp.eye(B, dtype=jnp.float32)

    def bd(w, k):
        m = jnp.kron(eye_b, w[:, :, k])
        return jnp.pad(m, ((0, Rmax - m.shape[0]), (0, Rmax - m.shape[1])))

    w_bd = jnp.stack([bd(w1, k) for k in range(K1)]
                     + [bd(w2, k) for k in range(K2)])           # (K1+K2, Rmax, Rmax)

    padc = lambda v: jnp.pad(v, (0, Cmax - v.shape[0]))
    bn_slab = jnp.stack([padc(g1), padc(be1), padc(g2), padc(be2)], axis=1)  # (Cmax, 4)

    kernel = functools.partial(_id_block1d_kernel, B=B, C0=C0, C1=C1, C2=C2,
                               K1=K1, K2=K2, L=L, Lpad=Lpad)
    vmem = pl.BlockSpec(memory_space=pltpu.MemorySpace.VMEM)

    flops = 2 * B * L * (K1 * C0 * C1 + K2 * C1 * C2) + 10 * B * L * (C1 + C2)
    bytes_accessed = 4 * (x2d.size + w_bd.size + bn_slab.size + B * C2 * Lpad)

    out2d = pl.pallas_call(
        kernel,
        out_shape=jax.ShapeDtypeStruct((B * C2, Lpad), jnp.float32),
        in_specs=[vmem, vmem, vmem],
        out_specs=vmem,
        compiler_params=pltpu.CompilerParams(vmem_limit_bytes=16 * 1024 * 1024),
        cost_estimate=pl.CostEstimate(flops=int(flops),
                                      transcendentals=int(2 * (C1 + C2)),
                                      bytes_accessed=int(bytes_accessed)),
    )(x2d, w_bd, bn_slab)

    return out2d[:, :L].reshape(B, C2, L)


def _reference(x, params):
    """Pure-JAX reference mirroring the PyTorch forward (training-mode BN, with conv biases)."""
    w1, b1, g1, be1, w2, b2, g2, be2 = params

    def conv(xin, w, b):
        pad = (w.shape[2] - 1) // 2
        y = jax.lax.conv_general_dilated(
            xin, w, window_strides=(1,), padding=[(pad, pad)],
            dimension_numbers=('NCH', 'OIH', 'NCH'))
        return y + b[None, :, None]

    def bn(xin, g, be):
        m = xin.mean(axis=(0, 2), keepdims=True)
        v = ((xin - m) ** 2).mean(axis=(0, 2), keepdims=True)
        return (xin - m) / jnp.sqrt(v + BN_EPS) * g[None, :, None] + be[None, :, None]

    h = jnp.maximum(bn(conv(x, w1, b1), g1, be1), 0.0)
    h = bn(conv(h, w2, b2), g2, be2)
    return jnp.maximum(h + x, 0.0)


def _init_params(key, channel, kernel_size):
    c0, c1, c2 = channel
    k1, k2 = kernel_size
    ks = jax.random.split(key, 8)
    w1 = 0.2 * jax.random.normal(ks[0], (c1, c0, k1), jnp.float32)
    b1 = 0.1 * jax.random.normal(ks[1], (c1,), jnp.float32)
    w2 = 0.2 * jax.random.normal(ks[2], (c2, c1, k2), jnp.float32)
    b2 = 0.1 * jax.random.normal(ks[3], (c2,), jnp.float32)
    g1 = 1.0 + 0.1 * jax.random.normal(ks[4], (c1,), jnp.float32)
    be1 = 0.1 * jax.random.normal(ks[5], (c1,), jnp.float32)
    g2 = 1.0 + 0.1 * jax.random.normal(ks[6], (c2,), jnp.float32)
    be2 = 0.1 * jax.random.normal(ks[7], (c2,), jnp.float32)
    return (w1, b1, g1, be1, w2, b2, g2, be2)


if __name__ == "__main__":
    key = jax.random.PRNGKey(0)
    kx, kp = jax.random.split(key)

    # id_Block1d(kernel_size=[3, 3], channel=[4, 4, 4], activation='relu', pre_actv=False)
    channel = [4, 4, 4]
    kernel_size = [3, 3]
    B, L = 2, 16

    x = jax.random.normal(kx, (B, channel[0], L), jnp.float32)
    params = _init_params(kp, channel, kernel_size)

    y = id_block1d_forward(x, params)
    y = jax.block_until_ready(y)

    y_ref = _reference(x, params)
    assert y.shape == (B, channel[2], L)
    assert jnp.allclose(y, y_ref, atol=1e-4, rtol=1e-4), "mismatch vs JAX reference"

    print("KERNEL_OK")
</pallas_src>

<mosaic_0001>
module attributes {stable_mosaic.version = 11 : i64} {
  func.func @_id_block1d_kernel(%arg0: memref<8x128xf32, #tpu.memory_space<vmem>>, %arg1: memref<6x8x8xf32, #tpu.memory_space<vmem>>, %arg2: memref<4x4xf32, #tpu.memory_space<vmem>>, %arg3: memref<8x128xf32, #tpu.memory_space<vmem>>) attributes {dimension_semantics = [], scalar_prefetch = 0 : i64, scratch_operands = 0 : i64, tpu.core_type = #tpu.core_type<tc>} {
    %c0 = arith.constant 0 : index
    %c0_0 = arith.constant 0 : index
    %0 = vector.load %arg0[%c0, %c0_0] : memref<8x128xf32, #tpu.memory_space<vmem>>, vector<8x128xf32>
    %c0_1 = arith.constant 0 : index
    %c0_2 = arith.constant 0 : index
    %c0_3 = arith.constant 0 : index
    %1 = vector.load %arg1[%c0_1, %c0_2, %c0_3] : memref<6x8x8xf32, #tpu.memory_space<vmem>>, vector<6x8x8xf32>
    %c0_4 = arith.constant 0 : index
    %c0_5 = arith.constant 0 : index
    %2 = vector.load %arg2[%c0_4, %c0_5] : memref<4x4xf32, #tpu.memory_space<vmem>>, vector<4x4xf32>
    %3 = tpu.iota {dimensions = array<i32: 1>} : vector<1x128xi32>
    %c16_i32 = arith.constant 16 : i32
    %4 = vector.broadcast %c16_i32 : i32 to vector<1x128xi32>
    %5 = arith.cmpi slt, %3, %4 : vector<1x128xi32>
    %6 = arith.extui %5 : vector<1x128xi1> to vector<1x128xi32>
    %7 = arith.sitofp %6 : vector<1x128xi32> to vector<1x128xf32>
    %c1_i32 = arith.constant 1 : i32
    %8 = tpu.dynamic_rotate %0 by %c1_i32 dim 1 : vector<8x128xf32>, i32 -> vector<8x128xf32>
    %9 = vector.extract_strided_slice %1 {offsets = [0, 0, 0], sizes = [1, 8, 8], strides = [1, 1, 1]} : vector<6x8x8xf32> to vector<1x8x8xf32>
    %10 = vector.shape_cast %9 : vector<1x8x8xf32> to vector<8x8xf32>
    %cst = arith.constant dense<0.000000e+00> : vector<8x128xf32>
    %11 = tpu.matmul %10, %8, %cst {dimension_numbers = #tpu.dot_dimension_numbers<[1], [0], [0], [1], [0, 0, 1, 1], [], []>} : vector<8x8xf32>, vector<8x128xf32>, vector<8x128xf32> -> vector<8x128xf32>
    %12 = vector.extract_strided_slice %1 {offsets = [1, 0, 0], sizes = [1, 8, 8], strides = [1, 1, 1]} : vector<6x8x8xf32> to vector<1x8x8xf32>
    %13 = vector.shape_cast %12 : vector<1x8x8xf32> to vector<8x8xf32>
    %cst_6 = arith.constant dense<0.000000e+00> : vector<8x128xf32>
    %14 = tpu.matmul %13, %0, %cst_6 {dimension_numbers = #tpu.dot_dimension_numbers<[1], [0], [0], [1], [0, 0, 1, 1], [], []>} : vector<8x8xf32>, vector<8x128xf32>, vector<8x128xf32> -> vector<8x128xf32>
    %15 = arith.addf %11, %14 : vector<8x128xf32>
    %c127_i32 = arith.constant 127 : i32
    %16 = tpu.dynamic_rotate %0 by %c127_i32 dim 1 : vector<8x128xf32>, i32 -> vector<8x128xf32>
    %17 = vector.extract_strided_slice %1 {offsets = [2, 0, 0], sizes = [1, 8, 8], strides = [1, 1, 1]} : vector<6x8x8xf32> to vector<1x8x8xf32>
    %18 = vector.shape_cast %17 : vector<1x8x8xf32> to vector<8x8xf32>
    %cst_7 = arith.constant dense<0.000000e+00> : vector<8x128xf32>
    %19 = tpu.matmul %18, %16, %cst_7 {dimension_numbers = #tpu.dot_dimension_numbers<[1], [0], [0], [1], [0, 0, 1, 1], [], []>} : vector<8x8xf32>, vector<8x128xf32>, vector<8x128xf32> -> vector<8x128xf32>
    %20 = arith.addf %15, %19 : vector<8x128xf32>
    %21 = vector.broadcast %7 : vector<1x128xf32> to vector<8x128xf32>
    %22 = arith.mulf %20, %21 : vector<8x128xf32>
    %cst_8 = arith.constant dense<0.000000e+00> : vector<8xf32>
    %23 = vector.multi_reduction <add>, %22, %cst_8 [1] : vector<8x128xf32> to vector<8xf32>
    %24 = vector.shape_cast %23 : vector<8xf32> to vector<8x1xf32>
    %25 = arith.mulf %22, %22 : vector<8x128xf32>
    %cst_9 = arith.constant dense<0.000000e+00> : vector<8xf32>
    %26 = vector.multi_reduction <add>, %25, %cst_9 [1] : vector<8x128xf32> to vector<8xf32>
    %27 = vector.shape_cast %26 : vector<8xf32> to vector<8x1xf32>
    %28 = vector.extract_strided_slice %24 {offsets = [0, 0], sizes = [4, 1], strides = [1, 1]} : vector<8x1xf32> to vector<4x1xf32>
    %29 = vector.extract_strided_slice %27 {offsets = [0, 0], sizes = [4, 1], strides = [1, 1]} : vector<8x1xf32> to vector<4x1xf32>
    %30 = vector.extract_strided_slice %24 {offsets = [4, 0], sizes = [4, 1], strides = [1, 1]} : vector<8x1xf32> to vector<4x1xf32>
    %31 = arith.addf %28, %30 : vector<4x1xf32>
    %32 = vector.extract_strided_slice %27 {offsets = [4, 0], sizes = [4, 1], strides = [1, 1]} : vector<8x1xf32> to vector<4x1xf32>
    %33 = arith.addf %29, %32 : vector<4x1xf32>
    %cst_10 = arith.constant 3.125000e-02 : f32
    %34 = vector.broadcast %cst_10 : f32 to vector<4x1xf32>
    %35 = arith.mulf %31, %34 : vector<4x1xf32>
    %cst_11 = arith.constant 3.125000e-02 : f32
    %36 = vector.broadcast %cst_11 : f32 to vector<4x1xf32>
    %37 = arith.mulf %33, %36 : vector<4x1xf32>
    %38 = arith.mulf %35, %35 : vector<4x1xf32>
    %39 = arith.subf %37, %38 : vector<4x1xf32>
    %40 = vector.extract_strided_slice %2 {offsets = [0, 0], sizes = [4, 1], strides = [1, 1]} : vector<4x4xf32> to vector<4x1xf32>
    %41 = vector.extract_strided_slice %2 {offsets = [0, 1], sizes = [4, 1], strides = [1, 1]} : vector<4x4xf32> to vector<4x1xf32>
    %cst_12 = arith.constant 9.99999974E-6 : f32
    %42 = vector.broadcast %cst_12 : f32 to vector<4x1xf32>
    %43 = arith.addf %39, %42 : vector<4x1xf32>
    %44 = math.rsqrt %43 : vector<4x1xf32>
    %45 = arith.mulf %40, %44 : vector<4x1xf32>
    %46 = arith.mulf %35, %45 : vector<4x1xf32>
    %47 = arith.subf %41, %46 : vector<4x1xf32>
    %48 = tpu.concatenate %45, %45 in 0 : vector<4x1xf32>, vector<4x1xf32> -> vector<8x1xf32>
    %49 = tpu.concatenate %47, %47 in 0 : vector<4x1xf32>, vector<4x1xf32> -> vector<8x1xf32>
    %50 = vector.broadcast %48 : vector<8x1xf32> to vector<8x128xf32>
    %51 = arith.mulf %22, %50 : vector<8x128xf32>
    %52 = vector.broadcast %49 : vector<8x1xf32> to vector<8x128xf32>
    %53 = arith.addf %51, %52 : vector<8x128xf32>
    %cst_13 = arith.constant 0.000000e+00 : f32
    %54 = vector.broadcast %cst_13 : f32 to vector<8x128xf32>
    %55 = arith.maximumf %53, %54 : vector<8x128xf32>
    %56 = vector.broadcast %7 : vector<1x128xf32> to vector<8x128xf32>
    %57 = arith.mulf %55, %56 : vector<8x128xf32>
    %c1_i32_14 = arith.constant 1 : i32
    %58 = tpu.dynamic_rotate %57 by %c1_i32_14 dim 1 : vector<8x128xf32>, i32 -> vector<8x128xf32>
    %59 = vector.extract_strided_slice %1 {offsets = [3, 0, 0], sizes = [1, 8, 8], strides = [1, 1, 1]} : vector<6x8x8xf32> to vector<1x8x8xf32>
    %60 = vector.shape_cast %59 : vector<1x8x8xf32> to vector<8x8xf32>
    %cst_15 = arith.constant dense<0.000000e+00> : vector<8x128xf32>
    %61 = tpu.matmul %60, %58, %cst_15 {dimension_numbers = #tpu.dot_dimension_numbers<[1], [0], [0], [1], [0, 0, 1, 1], [], []>} : vector<8x8xf32>, vector<8x128xf32>, vector<8x128xf32> -> vector<8x128xf32>
    %62 = vector.extract_strided_slice %1 {offsets = [4, 0, 0], sizes = [1, 8, 8], strides = [1, 1, 1]} : vector<6x8x8xf32> to vector<1x8x8xf32>
    %63 = vector.shape_cast %62 : vector<1x8x8xf32> to vector<8x8xf32>
    %cst_16 = arith.constant dense<0.000000e+00> : vector<8x128xf32>
    %64 = tpu.matmul %63, %57, %cst_16 {dimension_numbers = #tpu.dot_dimension_numbers<[1], [0], [0], [1], [0, 0, 1, 1], [], []>} : vector<8x8xf32>, vector<8x128xf32>, vector<8x128xf32> -> vector<8x128xf32>
    %65 = arith.addf %61, %64 : vector<8x128xf32>
    %c127_i32_17 = arith.constant 127 : i32
    %66 = tpu.dynamic_rotate %57 by %c127_i32_17 dim 1 : vector<8x128xf32>, i32 -> vector<8x128xf32>
    %67 = vector.extract_strided_slice %1 {offsets = [5, 0, 0], sizes = [1, 8, 8], strides = [1, 1, 1]} : vector<6x8x8xf32> to vector<1x8x8xf32>
    %68 = vector.shape_cast %67 : vector<1x8x8xf32> to vector<8x8xf32>
    %cst_18 = arith.constant dense<0.000000e+00> : vector<8x128xf32>
    %69 = tpu.matmul %68, %66, %cst_18 {dimension_numbers = #tpu.dot_dimension_numbers<[1], [0], [0], [1], [0, 0, 1, 1], [], []>} : vector<8x8xf32>, vector<8x128xf32>, vector<8x128xf32> -> vector<8x128xf32>
    %70 = arith.addf %65, %69 : vector<8x128xf32>
    %71 = vector.broadcast %7 : vector<1x128xf32> to vector<8x128xf32>
    %72 = arith.mulf %70, %71 : vector<8x128xf32>
    %cst_19 = arith.constant dense<0.000000e+00> : vector<8xf32>
    %73 = vector.multi_reduction <add>, %72, %cst_19 [1] : vector<8x128xf32> to vector<8xf32>
    %74 = vector.shape_cast %73 : vector<8xf32> to vector<8x1xf32>
    %75 = arith.mulf %72, %72 : vector<8x128xf32>
    %cst_20 = arith.constant dense<0.000000e+00> : vector<8xf32>
    %76 = vector.multi_reduction <add>, %75, %cst_20 [1] : vector<8x128xf32> to vector<8xf32>
    %77 = vector.shape_cast %76 : vector<8xf32> to vector<8x1xf32>
    %78 = vector.extract_strided_slice %74 {offsets = [0, 0], sizes = [4, 1], strides = [1, 1]} : vector<8x1xf32> to vector<4x1xf32>
    %79 = vector.extract_strided_slice %77 {offsets = [0, 0], sizes = [4, 1], strides = [1, 1]} : vector<8x1xf32> to vector<4x1xf32>
    %80 = vector.extract_strided_slice %74 {offsets = [4, 0], sizes = [4, 1], strides = [1, 1]} : vector<8x1xf32> to vector<4x1xf32>
    %81 = arith.addf %78, %80 : vector<4x1xf32>
    %82 = vector.extract_strided_slice %77 {offsets = [4, 0], sizes = [4, 1], strides = [1, 1]} : vector<8x1xf32> to vector<4x1xf32>
    %83 = arith.addf %79, %82 : vector<4x1xf32>
    %cst_21 = arith.constant 3.125000e-02 : f32
    %84 = vector.broadcast %cst_21 : f32 to vector<4x1xf32>
    %85 = arith.mulf %81, %84 : vector<4x1xf32>
    %cst_22 = arith.constant 3.125000e-02 : f32
    %86 = vector.broadcast %cst_22 : f32 to vector<4x1xf32>
    %87 = arith.mulf %83, %86 : vector<4x1xf32>
    %88 = arith.mulf %85, %85 : vector<4x1xf32>
    %89 = arith.subf %87, %88 : vector<4x1xf32>
    %90 = vector.extract_strided_slice %2 {offsets = [0, 2], sizes = [4, 1], strides = [1, 1]} : vector<4x4xf32> to vector<4x1xf32>
    %91 = vector.extract_strided_slice %2 {offsets = [0, 3], sizes = [4, 1], strides = [1, 1]} : vector<4x4xf32> to vector<4x1xf32>
    %cst_23 = arith.constant 9.99999974E-6 : f32
    %92 = vector.broadcast %cst_23 : f32 to vector<4x1xf32>
    %93 = arith.addf %89, %92 : vector<4x1xf32>
    %94 = math.rsqrt %93 : vector<4x1xf32>
    %95 = arith.mulf %90, %94 : vector<4x1xf32>
    %96 = arith.mulf %85, %95 : vector<4x1xf32>
    %97 = arith.subf %91, %96 : vector<4x1xf32>
    %98 = tpu.concatenate %95, %95 in 0 : vector<4x1xf32>, vector<4x1xf32> -> vector<8x1xf32>
    %99 = tpu.concatenate %97, %97 in 0 : vector<4x1xf32>, vector<4x1xf32> -> vector<8x1xf32>
    %100 = vector.broadcast %98 : vector<8x1xf32> to vector<8x128xf32>
    %101 = arith.mulf %72, %100 : vector<8x128xf32>
    %102 = vector.broadcast %99 : vector<8x1xf32> to vector<8x128xf32>
    %103 = arith.addf %101, %102 : vector<8x128xf32>
    %104 = arith.addf %103, %0 : vector<8x128xf32>
    %cst_24 = arith.constant 0.000000e+00 : f32
    %105 = vector.broadcast %cst_24 : f32 to vector<8x128xf32>
    %106 = arith.maximumf %104, %105 : vector<8x128xf32>
    %c0_25 = arith.constant 0 : index
    %c0_26 = arith.constant 0 : index
    %107 = vector.load %arg3[%c0_25, %c0_26] : memref<8x128xf32, #tpu.memory_space<vmem>>, vector<8x128xf32>
    tpu.vector_store %arg3[%c0_25, %c0_26], %106 {strides = array<i32>} : memref<8x128xf32, #tpu.memory_space<vmem>>, vector<8x128xf32>,
    return
  }
}

</mosaic_0001>

<llo_original>
// kernel: tpu_custom_call.1
$region0: #{tpu_custom_call.1}
  #allocation0 [shape = 'u32[]', space=smem, size = 0x4, offset = 0x4, fixed_abs, tag = 'smem constant byte address 0x4 - core index']
  #allocation1 [shape = 'u32[144,128]{1,0:T(1,128)}', space=vmem, size = 0x12000, scoped, tag = 'internal scratch']
  %s0 = inlined_call_operand.hbm [shape: f32[8,128], index: 0, kind: input, shape index: {}]
  %s1 = inlined_call_operand.hbm [shape: f32[6,8,8], index: 1, kind: input, shape index: {}]
  %s2 = inlined_call_operand.vmem [shape: f32[4,4], index: 2, kind: input, shape index: {}]
  %s3 = inlined_call_operand.hbm [shape: f32[8,128], index: 3, kind: output, shape index: {}]
  %s4 = sld [smem:[#allocation0]]
  $region30: #{tpu_custom_call.1} parent=0
    _
  %s6 = ssub.s32 1, %s4
  %s7 = scalar_select 0, %s6, %s4
  $region1: #{tpu_custom_call.1} parent=0
    #allocation2 [shape = 'u8[4096]{0}', space=vmem, size = 0x1000, scoped, tag = 'input window, operand 0, single buffered']
    #allocation3 [shape = 's32[1]{0}', space=sflag, size = 0x4, scoped, tag = 'scoped memory for tpu_custom_call.1']
    #allocation4 [shape = 's32[1]{0}', space=sflag, size = 0x4, scoped, tag = 'scoped memory for tpu_custom_call.1']
    #allocation5 [shape = 'u8[24576]{0}', space=vmem, size = 0x6000, scoped, tag = 'input window, operand 1, single buffered']
    #allocation6 [shape = 's32[1]{0}', space=sflag, size = 0x4, scoped, tag = 'scoped memory for tpu_custom_call.1']
    #allocation7 [shape = 'u8[4096]{0}', space=vmem, size = 0x1000, scoped, tag = 'output window, operand 0, single buffered']
    %8 = vsyncpa [#allocation3], 0
    %9 = vsyncpa [#allocation6], 0
    %10 = vsyncpa [#allocation4], 0
    // Predicated region
    $region2: #{tpu_custom_call.1} parent=1 // pred_check
      _
    $region3: #{tpu_custom_call.1} parent=1 // pred_check_branch
      %12 = sbr.rel (0) target = $region5
    $region4: #{tpu_custom_call.1} parent=1 // pred_region
      %s14 = ssub.s32 128, 128
      %15 = vsyncadd [#allocation3], %s14
      %s17 = sshll.u32 [#allocation2], 4
      %s18 = int_to_ptr.vmem [resolvable:$true] %s17
      %20 = dma.hbm_to_vmem [thread:$0]  %s0, 128, %s18, [#allocation3]
    $region5: #{tpu_custom_call.1} parent=1 // pred_fallthru
      _
    // Predicated region
    $region6: #{tpu_custom_call.1} parent=1 // pred_check
      _
    $region7: #{tpu_custom_call.1} parent=1 // pred_check_branch
      %22 = sbr.rel (0) target = $region9
    $region8: #{tpu_custom_call.1} parent=1 // pred_region
      %s24 = ssub.s32 768, 768
      %25 = vsyncadd [#allocation6], %s24
      %s26 = sshll.u32 [#allocation5], 4
      %s27 = int_to_ptr.vmem [resolvable:$true] %s26
      %32 = dma.hbm_to_vmem [thread:$0]  %s1, 768, %s27, [#allocation6], 128, 128, 8
    $region9: #{tpu_custom_call.1} parent=1 // pred_fallthru
      _
    // Predicated region
    $region10: #{tpu_custom_call.1} parent=1 // pred_check
      _
    $region11: #{tpu_custom_call.1} parent=1 // pred_check_branch
      %34 = sbr.rel (0) target = $region13
    $region12: #{tpu_custom_call.1} parent=1 // pred_region
      _
    $region13: #{tpu_custom_call.1} parent=1 // pred_fallthru
      _
    // Predicated region
    $region14: #{tpu_custom_call.1} parent=1 // pred_check
      _
    $region15: #{tpu_custom_call.1} parent=1 // pred_check_branch
      %36 = sbr.rel (0) target = $region17
    $region16: #{tpu_custom_call.1} parent=1 // pred_region
      %37 = dma.done [#allocation3], 128
    $region17: #{tpu_custom_call.1} parent=1 // pred_fallthru
      _
    // Predicated region
    $region18: #{tpu_custom_call.1} parent=1 // pred_check
      _
    $region19: #{tpu_custom_call.1} parent=1 // pred_check_branch
      %39 = sbr.rel (0) target = $region21
    $region20: #{tpu_custom_call.1} parent=1 // pred_region
      %40 = dma.done [#allocation6], 768
    $region21: #{tpu_custom_call.1} parent=1 // pred_fallthru
      _
    %v41 = vld [vmem:[#allocation2] sm:$0xff]
    %v42 = vld [vmem:[#allocation5] sm:$0xff]
    %v43 = vld [vmem:[#allocation5 + $0x8] sm:$0xff]
    %v44 = vld [vmem:[#allocation5 + $0x10] sm:$0xff]
    %v45 = vld [vmem:[#allocation5 + $0x18] sm:$0xff]
    %v46 = vld [vmem:[#allocation5 + $0x20] sm:$0xff]
    %v47 = vld [vmem:[#allocation5 + $0x28] sm:$0xff]
    %v48 = vld [vmem:[%s2] sm:$0xf]
    %v49 = vlaneseq
    %v50 = vand.u32 %v49, 127
    %vm51 = vcmp.lt.s32.totalorder %v50, 16
    %v52 = vsel %vm51, 1, 0
    %v53 = vcvt.s32.f32 %v52
    %54 = vrot.lane.b32.xlu0 %v41, 1
    %v55 = vpop.permute.xlu0 %54
    %vm56 = vcmask 64512
    %v58 = vsel %vm56, %v43, 0
    %60 = vmatprep.subr.mxu0 0.0
    %61 = vmatpush1.msra.mxu0 %v41
    %62 = vmatprep.subr.mxu0 0.0
    %63 = vmatpush1.msra.mxu0 0.0
    %64 = vmatprep.subr.mxu0 0.0
    %65 = vmatpush1.msra.mxu0 0.0
    %66 = vmatprep.subr.mxu0 0.0
    %67 = vmatpush1.msra.mxu0 0.0
    %68 = vmatprep.subr.mxu0 0.0
    %69 = vmatpush1.msra.mxu0 0.0
    %70 = vmatprep.subr.mxu0 0.0
    %71 = vmatpush1.msra.mxu0 0.0
    %72 = vmatprep.subr.mxu0 0.0
    %73 = vmatpush1.msra.mxu0 0.0
    %74 = vmatprep.subr.mxu0 0.0
    %75 = vmatpush1.msra.mxu0 0.0
    %76 = vmatprep.subr.mxu0 0.0
    %77 = vmatpush1.msra.mxu0 0.0
    %78 = vmatprep.subr.mxu0 0.0
    %79 = vmatpush1.msra.mxu0 0.0
    %80 = vmatprep.subr.mxu0 0.0
    %81 = vmatpush1.msra.mxu0 0.0
    %82 = vmatprep.subr.mxu0 0.0
    %83 = vmatpush1.msra.mxu0 0.0
    %84 = vmatprep.subr.mxu0 0.0
    %85 = vmatpush1.msra.mxu0 0.0
    %86 = vmatprep.subr.mxu0 0.0
    %87 = vmatpush1.msra.mxu0 0.0
    %88 = vmatprep.subr.mxu0 0.0
    %89 = vmatpush1.msra.mxu0 0.0
    %90 = vmatprep.subr.mxu0 0.0
    %91 = vmatpush1.msra.mxu0 0.0
    %92 = vmatprep.subr.mxu0 0.0
    %93 = vmatpush1.msra.mxu0 0.0
    %94 = vmatprep.subr.mxu0 0.0
    %95 = vmatpush1.msra.mxu0 0.0
    %96 = vmatprep.subr.mxu0 0.0
    %97 = vmatpush1.msra.mxu0 0.0
    %98 = vmatprep.subr.mxu0 0.0
    %99 = vmatpush1.msra.mxu0 0.0
    %100 = vmatprep.subr.mxu0 0.0
    %101 = vmatpush1.msra.mxu0 0.0
    %102 = vmatprep.subr.mxu0 0.0
    %103 = vmatpush1.msra.mxu0 0.0
    %104 = vmatprep.subr.mxu0 0.0
    %105 = vmatpush1.msra.mxu0 0.0
    %106 = vmatprep.subr.mxu0 0.0
    %107 = vmatpush1.msra.mxu0 0.0
    %108 = vmatprep.subr.mxu0 0.0
    %109 = vmatpush1.msra.mxu0 0.0
    %110 = vmatprep.subr.mxu0 0.0
    %111 = vmatpush1.msra.mxu0 0.0
    %112 = vmatprep.subr.mxu0 0.0
    %113 = vmatpush1.msra.mxu0 0.0
    %114 = vmatprep.subr.mxu0 0.0
    %115 = vmatpush1.msra.mxu0 0.0
    %116 = vmatprep.subr.mxu0 0.0
    %117 = vmatpush1.msra.mxu0 0.0
    %118 = vmatprep.subr.mxu0 0.0
    %119 = vmatpush1.msra.mxu0 0.0
    %120 = vmatprep.subr.mxu0 0.0
    %121 = vmatpush1.msra.mxu0 0.0
    %122 = vmatprep.subr.mxu0 0.0
    %123 = vmatpush1.msra.mxu0 0.0
    %124 = vmatprep.mubr.f32.mxu0 0.0
    %125 = vmatmul.mubr.f32.gmra.mrb[0].mxu0 %v58
    %v126 = vpop.f32.mrb[0].mxu0
    %v127 = vadd.f32 0.0, %v126
    %v128 = vpop.f32.mrb[0].mxu0
    %129 = vdwg.mxu0
    %v131 = vsel %vm56, %v42, 0
    %133 = vmatprep.subr.mxu0 0.0
    %134 = vmatpush1.msra.mxu0 %v55
    %135 = vmatprep.subr.mxu0 0.0
    %136 = vmatpush1.msra.mxu0 0.0
    %137 = vmatprep.subr.mxu0 0.0
    %138 = vmatpush1.msra.mxu0 0.0
    %139 = vmatprep.subr.mxu0 0.0
    %140 = vmatpush1.msra.mxu0 0.0
    %141 = vmatprep.subr.mxu0 0.0
    %142 = vmatpush1.msra.mxu0 0.0
    %143 = vmatprep.subr.mxu0 0.0
    %144 = vmatpush1.msra.mxu0 0.0
    %145 = vmatprep.subr.mxu0 0.0
    %146 = vmatpush1.msra.mxu0 0.0
    %147 = vmatprep.subr.mxu0 0.0
    %148 = vmatpush1.msra.mxu0 0.0
    %149 = vmatprep.subr.mxu0 0.0
    %150 = vmatpush1.msra.mxu0 0.0
    %151 = vmatprep.subr.mxu0 0.0
    %152 = vmatpush1.msra.mxu0 0.0
    %153 = vmatprep.subr.mxu0 0.0
    %154 = vmatpush1.msra.mxu0 0.0
    %155 = vmatprep.subr.mxu0 0.0
    %156 = vmatpush1.msra.mxu0 0.0
    %157 = vmatprep.subr.mxu0 0.0
    %158 = vmatpush1.msra.mxu0 0.0
    %159 = vmatprep.subr.mxu0 0.0
    %160 = vmatpush1.msra.mxu0 0.0
    %161 = vmatprep.subr.mxu0 0.0
    %162 = vmatpush1.msra.mxu0 0.0
    %163 = vmatprep.subr.mxu0 0.0
    %164 = vmatpush1.msra.mxu0 0.0
    %165 = vmatprep.subr.mxu0 0.0
    %166 = vmatpush1.msra.mxu0 0.0
    %167 = vmatprep.subr.mxu0 0.0
    %168 = vmatpush1.msra.mxu0 0.0
    %169 = vmatprep.subr.mxu0 0.0
    %170 = vmatpush1.msra.mxu0 0.0
    %171 = vmatprep.subr.mxu0 0.0
    %172 = vmatpush1.msra.mxu0 0.0
    %173 = vmatprep.subr.mxu0 0.0
    %174 = vmatpush1.msra.mxu0 0.0
    %175 = vmatprep.subr.mxu0 0.0
    %176 = vmatpush1.msra.mxu0 0.0
    %177 = vmatprep.subr.mxu0 0.0
    %178 = vmatpush1.msra.mxu0 0.0
    %179 = vmatprep.subr.mxu0 0.0
    %180 = vmatpush1.msra.mxu0 0.0
    %181 = vmatprep.subr.mxu0 0.0
    %182 = vmatpush1.msra.mxu0 0.0
    %183 = vmatprep.subr.mxu0 0.0
    %184 = vmatpush1.msra.mxu0 0.0
    %185 = vmatprep.subr.mxu0 0.0
    %186 = vmatpush1.msra.mxu0 0.0
    %187 = vmatprep.subr.mxu0 0.0
    %188 = vmatpush1.msra.mxu0 0.0
    %189 = vmatprep.subr.mxu0 0.0
    %190 = vmatpush1.msra.mxu0 0.0
    %191 = vmatprep.subr.mxu0 0.0
    %192 = vmatpush1.msra.mxu0 0.0
    %193 = vmatprep.subr.mxu0 0.0
    %194 = vmatpush1.msra.mxu0 0.0
    %195 = vmatprep.subr.mxu0 0.0
    %196 = vmatpush1.msra.mxu0 0.0
    %197 = vmatprep.mubr.f32.mxu0 0.0
    %198 = vmatmul.mubr.f32.gmra.mrb[0].mxu0 %v131
    %v199 = vpop.f32.mrb[0].mxu0
    %v200 = vadd.f32 %v127, %v199
    %v201 = vpop.f32.mrb[0].mxu0
    %202 = vdwg.mxu0
    %203 = vrot.lane.b32.xlu0 %v41, 127
    %v204 = vpop.permute.xlu0 %203
    %v206 = vsel %vm56, %v44, 0
    %208 = vmatprep.subr.mxu0 0.0
    %209 = vmatpush1.msra.mxu0 %v204
    %210 = vmatprep.subr.mxu0 0.0
    %211 = vmatpush1.msra.mxu0 0.0
    %212 = vmatprep.subr.mxu0 0.0
    %213 = vmatpush1.msra.mxu0 0.0
    %214 = vmatprep.subr.mxu0 0.0
    %215 = vmatpush1.msra.mxu0 0.0
    %216 = vmatprep.subr.mxu0 0.0
    %217 = vmatpush1.msra.mxu0 0.0
    %218 = vmatprep.subr.mxu0 0.0
    %219 = vmatpush1.msra.mxu0 0.0
    %220 = vmatprep.subr.mxu0 0.0
    %221 = vmatpush1.msra.mxu0 0.0
    %222 = vmatprep.subr.mxu0 0.0
    %223 = vmatpush1.msra.mxu0 0.0
    %224 = vmatprep.subr.mxu0 0.0
    %225 = vmatpush1.msra.mxu0 0.0
    %226 = vmatprep.subr.mxu0 0.0
    %227 = vmatpush1.msra.mxu0 0.0
    %228 = vmatprep.subr.mxu0 0.0
    %229 = vmatpush1.msra.mxu0 0.0
    %230 = vmatprep.subr.mxu0 0.0
    %231 = vmatpush1.msra.mxu0 0.0
    %232 = vmatprep.subr.mxu0 0.0
    %233 = vmatpush1.msra.mxu0 0.0
    %234 = vmatprep.subr.mxu0 0.0
    %235 = vmatpush1.msra.mxu0 0.0
    %236 = vmatprep.subr.mxu0 0.0
    %237 = vmatpush1.msra.mxu0 0.0
    %238 = vmatprep.subr.mxu0 0.0
    %239 = vmatpush1.msra.mxu0 0.0
    %240 = vmatprep.subr.mxu0 0.0
    %241 = vmatpush1.msra.mxu0 0.0
    %242 = vmatprep.subr.mxu0 0.0
    %243 = vmatpush1.msra.mxu0 0.0
    %244 = vmatprep.subr.mxu0 0.0
    %245 = vmatpush1.msra.mxu0 0.0
    %246 = vmatprep.subr.mxu0 0.0
    %247 = vmatpush1.msra.mxu0 0.0
    %248 = vmatprep.subr.mxu0 0.0
    %249 = vmatpush1.msra.mxu0 0.0
    %250 = vmatprep.subr.mxu0 0.0
    %251 = vmatpush1.msra.mxu0 0.0
    %252 = vmatprep.subr.mxu0 0.0
    %253 = vmatpush1.msra.mxu0 0.0
    %254 = vmatprep.subr.mxu0 0.0
    %255 = vmatpush1.msra.mxu0 0.0
    %256 = vmatprep.subr.mxu0 0.0
    %257 = vmatpush1.msra.mxu0 0.0
    %258 = vmatprep.subr.mxu0 0.0
    %259 = vmatpush1.msra.mxu0 0.0
    %260 = vmatprep.subr.mxu0 0.0
    %261 = vmatpush1.msra.mxu0 0.0
    %262 = vmatprep.subr.mxu0 0.0
    %263 = vmatpush1.msra.mxu0 0.0
    %264 = vmatprep.subr.mxu0 0.0
    %265 = vmatpush1.msra.mxu0 0.0
    %266 = vmatprep.subr.mxu0 0.0
    %267 = vmatpush1.msra.mxu0 0.0
    %268 = vmatprep.subr.mxu0 0.0
    %269 = vmatpush1.msra.mxu0 0.0
    %270 = vmatprep.subr.mxu0 0.0
    %271 = vmatpush1.msra.mxu0 0.0
    %272 = vmatprep.mubr.f32.mxu0 0.0
    %273 = vmatmul.mubr.f32.gmra.mrb[0].mxu0 %v206
    %v274 = vpop.f32.mrb[0].mxu0
    %v275 = vadd.f32 0.0, %v274
    %v276 = vpop.f32.mrb[0].mxu0
    %277 = vdwg.mxu0
    %v278 = vadd.f32 %v200, %v275
    %v279 = vmul.f32 %v278, %v53
    %280 = vadd.xlane.f32.xlu0 %v279
    %v281 = vpop.xlane.xlu0 %280
    %v282 = vmul.f32 %v279, %v279
    %283 = vadd.xlane.f32.xlu0 %v282
    %v284 = vpop.xlane.xlu0 %283
    %v286 = vrot.slane %v281, 4
    %v288 = vadd.f32 %v281, %v286
    %v290 = vrot.slane %v284, 4
    %v292 = vadd.f32 %v284, %v290
    %v293 = vmul.f32 %v288, 0.03125
    %v294 = vmul.f32 %v292, 0.03125
    %v295 = vmul.f32 %v293, %v293
    %v296 = vsub.f32 %v294, %v295
    %v297 = vadd.f32 %v296, 1e-05
    %v298 = vrsqrt.pop %v297
    %v299 = vmul.f32 %v48, %v298
    %v300 = vmul.f32 %v293, %v299
    %302 = vrot.lane.b32.xlu0 %v300, 1
    %v303 = vpop.permute.xlu0 %302
    %v305 = vsub.f32 %v48, %v303
    %v307 = vrot.slane %v299, 4
    %vm309 = vcmask 1043456
    %v310 = vsel %vm309, %v299, %v307
    %v312 = vrot.slane %v305, 4
    %v314 = vsel %vm309, %v305, %v312
    %316 = vset.pattern.permute.xlu0 0
    %317 = vperm.xlu0 %316, %v310
    %v318 = vpop.permute.xlu0 %317
    %v320 = vmul.f32 %v279, %v318
    %322 = vset.pattern.permute.xlu0 1
    %323 = vperm.xlu0 %322, %v314
    %v324 = vpop.permute.xlu0 %323
    %v326 = vadd.f32 %v320, %v324
    %v327 = vmax.f32 %v326, 0.0
    %v328 = vmul.f32 %v327, %v53
    %329 = vrot.lane.b32.xlu0 %v328, 1
    %v330 = vpop.permute.xlu0 %329
    %v332 = vsel %vm56, %v46, 0
    %334 = vmatprep.subr.mxu0 0.0
    %335 = vmatpush1.msra.mxu0 %v328
    %336 = vmatprep.subr.mxu0 0.0
    %337 = vmatpush1.msra.mxu0 0.0
    %338 = vmatprep.subr.mxu0 0.0
    %339 = vmatpush1.msra.mxu0 0.0
    %340 = vmatprep.subr.mxu0 0.0
    %341 = vmatpush1.msra.mxu0 0.0
    %342 = vmatprep.subr.mxu0 0.0
    %343 = vmatpush1.msra.mxu0 0.0
    %344 = vmatprep.subr.mxu0 0.0
    %345 = vmatpush1.msra.mxu0 0.0
    %346 = vmatprep.subr.mxu0 0.0
    %347 = vmatpush1.msra.mxu0 0.0
    %348 = vmatprep.subr.mxu0 0.0
    %349 = vmatpush1.msra.mxu0 0.0
    %350 = vmatprep.subr.mxu0 0.0
    %351 = vmatpush1.msra.mxu0 0.0
    %352 = vmatprep.subr.mxu0 0.0
    %353 = vmatpush1.msra.mxu0 0.0
    %354 = vmatprep.subr.mxu0 0.0
    %355 = vmatpush1.msra.mxu0 0.0
    %356 = vmatprep.subr.mxu0 0.0
    %357 = vmatpush1.msra.mxu0 0.0
    %358 = vmatprep.subr.mxu0 0.0
    %359 = vmatpush1.msra.mxu0 0.0
    %360 = vmatprep.subr.mxu0 0.0
    %361 = vmatpush1.msra.mxu0 0.0
    %362 = vmatprep.subr.mxu0 0.0
    %363 = vmatpush1.msra.mxu0 0.0
    %364 = vmatprep.subr.mxu0 0.0
    %365 = vmatpush1.msra.mxu0 0.0
    %366 = vmatprep.subr.mxu0 0.0
    %367 = vmatpush1.msra.mxu0 0.0
    %368 = vmatprep.subr.mxu0 0.0
    %369 = vmatpush1.msra.mxu0 0.0
    %370 = vmatprep.subr.mxu0 0.0
    %371 = vmatpush1.msra.mxu0 0.0
    %372 = vmatprep.subr.mxu0 0.0
    %373 = vmatpush1.msra.mxu0 0.0
    %374 = vmatprep.subr.mxu0 0.0
    %375 = vmatpush1.msra.mxu0 0.0
    %376 = vmatprep.subr.mxu0 0.0
    %377 = vmatpush1.msra.mxu0 0.0
    %378 = vmatprep.subr.mxu0 0.0
    %379 = vmatpush1.msra.mxu0 0.0
    %380 = vmatprep.subr.mxu0 0.0
    %381 = vmatpush1.msra.mxu0 0.0
    %382 = vmatprep.subr.mxu0 0.0
    %383 = vmatpush1.msra.mxu0 0.0
    %384 = vmatprep.subr.mxu0 0.0
    %385 = vmatpush1.msra.mxu0 0.0
    %386 = vmatprep.subr.mxu0 0.0
    %387 = vmatpush1.msra.mxu0 0.0
    %388 = vmatprep.subr.mxu0 0.0
    %389 = vmatpush1.msra.mxu0 0.0
    %390 = vmatprep.subr.mxu0 0.0
    %391 = vmatpush1.msra.mxu0 0.0
    %392 = vmatprep.subr.mxu0 0.0
    %393 = vmatpush1.msra.mxu0 0.0
    %394 = vmatprep.subr.mxu0 0.0
    %395 = vmatpush1.msra.mxu0 0.0
    %396 = vmatprep.subr.mxu0 0.0
    %397 = vmatpush1.msra.mxu0 0.0
    %398 = vmatprep.mubr.f32.mxu0 0.0
    %399 = vmatmul.mubr.f32.gmra.mrb[0].mxu0 %v332
    %v400 = vpop.f32.mrb[0].mxu0
    %v401 = vadd.f32 0.0, %v400
    %v402 = vpop.f32.mrb[0].mxu0
    %403 = vdwg.mxu0
    %v405 = vsel %vm56, %v45, 0
    %407 = vmatprep.subr.mxu0 0.0
    %408 = vmatpush1.msra.mxu0 %v330
    %409 = vmatprep.subr.mxu0 0.0
    %410 = vmatpush1.msra.mxu0 0.0
    %411 = vmatprep.subr.mxu0 0.0
    %412 = vmatpush1.msra.mxu0 0.0
    %413 = vmatprep.subr.mxu0 0.0
    %414 = vmatpush1.msra.mxu0 0.0
    %415 = vmatprep.subr.mxu0 0.0
    %416 = vmatpush1.msra.mxu0 0.0
    %417 = vmatprep.subr.mxu0 0.0
    %418 = vmatpush1.msra.mxu0 0.0
    %419 = vmatprep.subr.mxu0 0.0
    %420 = vmatpush1.msra.mxu0 0.0
    %421 = vmatprep.subr.mxu0 0.0
    %422 = vmatpush1.msra.mxu0 0.0
    %423 = vmatprep.subr.mxu0 0.0
    %424 = vmatpush1.msra.mxu0 0.0
    %425 = vmatprep.subr.mxu0 0.0
    %426 = vmatpush1.msra.mxu0 0.0
    %427 = vmatprep.subr.mxu0 0.0
    %428 = vmatpush1.msra.mxu0 0.0
    %429 = vmatprep.subr.mxu0 0.0
    %430 = vmatpush1.msra.mxu0 0.0
    %431 = vmatprep.subr.mxu0 0.0
    %432 = vmatpush1.msra.mxu0 0.0
    %433 = vmatprep.subr.mxu0 0.0
    %434 = vmatpush1.msra.mxu0 0.0
    %435 = vmatprep.subr.mxu0 0.0
    %436 = vmatpush1.msra.mxu0 0.0
    %437 = vmatprep.subr.mxu0 0.0
    %438 = vmatpush1.msra.mxu0 0.0
    %439 = vmatprep.subr.mxu0 0.0
    %440 = vmatpush1.msra.mxu0 0.0
    %441 = vmatprep.subr.mxu0 0.0
    %442 = vmatpush1.msra.mxu0 0.0
    %443 = vmatprep.subr.mxu0 0.0
    %444 = vmatpush1.msra.mxu0 0.0
    %445 = vmatprep.subr.mxu0 0.0
    %446 = vmatpush1.msra.mxu0 0.0
    %447 = vmatprep.subr.mxu0 0.0
    %448 = vmatpush1.msra.mxu0 0.0
    %449 = vmatprep.subr.mxu0 0.0
    %450 = vmatpush1.msra.mxu0 0.0
    %451 = vmatprep.subr.mxu0 0.0
    %452 = vmatpush1.msra.mxu0 0.0
    %453 = vmatprep.subr.mxu0 0.0
    %454 = vmatpush1.msra.mxu0 0.0
    %455 = vmatprep.subr.mxu0 0.0
    %456 = vmatpush1.msra.mxu0 0.0
    %457 = vmatprep.subr.mxu0 0.0
    %458 = vmatpush1.msra.mxu0 0.0
    %459 = vmatprep.subr.mxu0 0.0
    %460 = vmatpush1.msra.mxu0 0.0
    %461 = vmatprep.subr.mxu0 0.0
    %462 = vmatpush1.msra.mxu0 0.0
    %463 = vmatprep.subr.mxu0 0.0
    %464 = vmatpush1.msra.mxu0 0.0
    %465 = vmatprep.subr.mxu0 0.0
    %466 = vmatpush1.msra.mxu0 0.0
    %467 = vmatprep.subr.mxu0 0.0
    %468 = vmatpush1.msra.mxu0 0.0
    %469 = vmatprep.subr.mxu0 0.0
    %470 = vmatpush1.msra.mxu0 0.0
    %471 = vmatprep.mubr.f32.mxu0 0.0
    %472 = vmatmul.mubr.f32.gmra.mrb[0].mxu0 %v405
    %v473 = vpop.f32.mrb[0].mxu0
    %v474 = vadd.f32 %v401, %v473
    %v475 = vpop.f32.mrb[0].mxu0
    %476 = vdwg.mxu0
    %477 = vrot.lane.b32.xlu0 %v328, 127
    %v478 = vpop.permute.xlu0 %477
    %v480 = vsel %vm56, %v47, 0
    %482 = vmatprep.subr.mxu0 0.0
    %483 = vmatpush1.msra.mxu0 %v478
    %484 = vmatprep.subr.mxu0 0.0
    %485 = vmatpush1.msra.mxu0 0.0
    %486 = vmatprep.subr.mxu0 0.0
    %487 = vmatpush1.msra.mxu0 0.0
    %488 = vmatprep.subr.mxu0 0.0
    %489 = vmatpush1.msra.mxu0 0.0
    %490 = vmatprep.subr.mxu0 0.0
    %491 = vmatpush1.msra.mxu0 0.0
    %492 = vmatprep.subr.mxu0 0.0
    %493 = vmatpush1.msra.mxu0 0.0
    %494 = vmatprep.subr.mxu0 0.0
    %495 = vmatpush1.msra.mxu0 0.0
    %496 = vmatprep.subr.mxu0 0.0
    %497 = vmatpush1.msra.mxu0 0.0
    %498 = vmatprep.subr.mxu0 0.0
    %499 = vmatpush1.msra.mxu0 0.0
    %500 = vmatprep.subr.mxu0 0.0
    %501 = vmatpush1.msra.mxu0 0.0
    %502 = vmatprep.subr.mxu0 0.0
    %503 = vmatpush1.msra.mxu0 0.0
    %504 = vmatprep.subr.mxu0 0.0
    %505 = vmatpush1.msra.mxu0 0.0
    %506 = vmatprep.subr.mxu0 0.0
    %507 = vmatpush1.msra.mxu0 0.0
    %508 = vmatprep.subr.mxu0 0.0
    %509 = vmatpush1.msra.mxu0 0.0
    %510 = vmatprep.subr.mxu0 0.0
    %511 = vmatpush1.msra.mxu0 0.0
    %512 = vmatprep.subr.mxu0 0.0
    %513 = vmatpush1.msra.mxu0 0.0
    %514 = vmatprep.subr.mxu0 0.0
    %515 = vmatpush1.msra.mxu0 0.0
    %516 = vmatprep.subr.mxu0 0.0
    %517 = vmatpush1.msra.mxu0 0.0
    %518 = vmatprep.subr.mxu0 0.0
    %519 = vmatpush1.msra.mxu0 0.0
    %520 = vmatprep.subr.mxu0 0.0
    %521 = vmatpush1.msra.mxu0 0.0
    %522 = vmatprep.subr.mxu0 0.0
    %523 = vmatpush1.msra.mxu0 0.0
    %524 = vmatprep.subr.mxu0 0.0
    %525 = vmatpush1.msra.mxu0 0.0
    %526 = vmatprep.subr.mxu0 0.0
    %527 = vmatpush1.msra.mxu0 0.0
    %528 = vmatprep.subr.mxu0 0.0
    %529 = vmatpush1.msra.mxu0 0.0
    %530 = vmatprep.subr.mxu0 0.0
    %531 = vmatpush1.msra.mxu0 0.0
    %532 = vmatprep.subr.mxu0 0.0
    %533 = vmatpush1.msra.mxu0 0.0
    %534 = vmatprep.subr.mxu0 0.0
    %535 = vmatpush1.msra.mxu0 0.0
    %536 = vmatprep.subr.mxu0 0.0
    %537 = vmatpush1.msra.mxu0 0.0
    %538 = vmatprep.subr.mxu0 0.0
    %539 = vmatpush1.msra.mxu0 0.0
    %540 = vmatprep.subr.mxu0 0.0
    %541 = vmatpush1.msra.mxu0 0.0
    %542 = vmatprep.subr.mxu0 0.0
    %543 = vmatpush1.msra.mxu0 0.0
    %544 = vmatprep.subr.mxu0 0.0
    %545 = vmatpush1.msra.mxu0 0.0
    %546 = vmatprep.mubr.f32.mxu0 0.0
    %547 = vmatmul.mubr.f32.gmra.mrb[0].mxu0 %v480
    %v548 = vpop.f32.mrb[0].mxu0
    %v549 = vadd.f32 0.0, %v548
    %v550 = vpop.f32.mrb[0].mxu0
    %551 = vdwg.mxu0
    %v552 = vadd.f32 %v474, %v549
    %v553 = vmul.f32 %v552, %v53
    %554 = vadd.xlane.f32.xlu0 %v553
    %v555 = vpop.xlane.xlu0 %554
    %v556 = vmul.f32 %v553, %v553
    %557 = vadd.xlane.f32.xlu0 %v556
    %v558 = vpop.xlane.xlu0 %557
    %v560 = vrot.slane %v555, 4
    %v562 = vadd.f32 %v555, %v560
    %v564 = vrot.slane %v558, 4
    %v566 = vadd.f32 %v558, %v564
    %v567 = vmul.f32 %v562, 0.03125
    %v568 = vmul.f32 %v566, 0.03125
    %v569 = vmul.f32 %v567, %v567
    %v570 = vsub.f32 %v568, %v569
    %v571 = vadd.f32 %v570, 1e-05
    %v572 = vrsqrt.pop %v571
    %574 = vrot.lane.b32.xlu0 %v572, 2
    %v575 = vpop.permute.xlu0 %574
    %v577 = vmul.f32 %v48, %v575
    %579 = vrot.lane.b32.xlu0 %v577, 126
    %v580 = vpop.permute.xlu0 %579
    %v582 = vmul.f32 %v567, %v580
    %584 = vrot.lane.b32.xlu0 %v582, 3
    %v585 = vpop.permute.xlu0 %584
    %v587 = vsub.f32 %v48, %v585
    %v588 = vrot.slane %v577, 4
    %v590 = vsel %vm309, %v577, %v588
    %v592 = vrot.slane %v587, 4
    %v594 = vsel %vm309, %v587, %v592
    %596 = vset.pattern.permute.xlu0 2
    %597 = vperm.xlu0 %596, %v590
    %v598 = vpop.permute.xlu0 %597
    %v600 = vmul.f32 %v553, %v598
    %602 = vset.pattern.permute.xlu0 3
    %603 = vperm.xlu0 %602, %v594
    %v604 = vpop.permute.xlu0 %603
    %v606 = vadd.f32 %v600, %v604
    %v607 = vadd.f32 %v606, %v41
    %v608 = vmax.f32 %v607, 0.0
    %609 = vst [vmem:[#allocation7] sm:$0xff] %v608
    // Predicated region
    $region22: #{tpu_custom_call.1} parent=1 // pred_check
      _
    $region23: #{tpu_custom_call.1} parent=1 // pred_check_branch
      %611 = sbr.rel (0) target = $region25
    $region24: #{tpu_custom_call.1} parent=1 // pred_region
      %s613 = ssub.s32 128, 128
      %614 = vsyncadd [#allocation4], %s613
      %s616 = sshll.u32 [#allocation7], 4
      %s617 = int_to_ptr.vmem [resolvable:$true] %s616
      %619 = dma.vmem_to_hbm [thread:$0]  %s617, 128, %s3, [#allocation4]
    $region25: #{tpu_custom_call.1} parent=1 // pred_fallthru
      _
    // Predicated region
    $region26: #{tpu_custom_call.1} parent=1 // pred_check
      _
    $region27: #{tpu_custom_call.1} parent=1 // pred_check_branch
      %621 = sbr.rel (0) target = $region29
    $region28: #{tpu_custom_call.1} parent=1 // pred_region
      %622 = dma.done [#allocation4], 128
    $region29: #{tpu_custom_call.1} parent=1 // pred_fallthru
      _
    %623 = vsyncpa [#allocation3], 1
    %624 = vsyncpa [#allocation6], 1
    %625 = vsyncpa [#allocation4], 1

</llo_original>
